<compile_context>
chip_gen: v7x
topology: tpu7x:2x2x1
jax: 0.10.0
libtpu: 0.0.40
codegen_flags: <defaults>
</compile_context>

<pallas_src>
import functools

import jax
import jax.numpy as jnp
from jax import lax
from jax.experimental import pallas as pl
from jax.experimental.pallas import tpu as pltpu


def _round_up(n, m):
    return ((n + m - 1) // m) * m


def _fused_kernel(x_ref, p_ref, o_ref, *, inputs_pad, h_pad, out_pad,
                  outputs, outputs_):
    # --- static slab views (zero runtime cost) --------------------------------
    r_b1 = inputs_pad
    r_w2 = inputs_pad + 8
    r_b2 = inputs_pad + 8 + h_pad

    x = x_ref[...]
    w1 = p_ref[0:inputs_pad, 0:h_pad]
    b1 = p_ref[r_b1:r_b1 + 1, 0:h_pad]
    w2 = p_ref[r_w2:r_w2 + h_pad, 0:out_pad]
    b2 = p_ref[r_b2:r_b2 + 1, 0:out_pad]

    # --- layer 1 (all heads fused) + relu, layer 2 (block-diagonal) -----------
    h = jnp.maximum(jnp.dot(x, w1, preferred_element_type=jnp.float32) + b1, 0.0)
    y = jnp.dot(h, w2, preferred_element_type=jnp.float32) + b2

    # --- lane-masked segment softmax, single exp over the whole slab ----------
    lane = lax.broadcasted_iota(jnp.int32, y.shape, 1)
    in_a = (lane >= 1) & (lane < 1 + outputs)                       # actor
    in_b = (lane >= 1 + outputs) & (lane < 1 + outputs + outputs_)  # actor_

    neg_inf = jnp.float32(-jnp.inf)
    pos_inf = jnp.float32(jnp.inf)
    m_a = jnp.max(jnp.where(in_a, y, neg_inf), axis=1, keepdims=True)
    m_b = jnp.max(jnp.where(in_b, y, neg_inf), axis=1, keepdims=True)
    # per-lane subtrahend: segment max inside its segment, +inf elsewhere
    sub = jnp.where(in_a, m_a, jnp.where(in_b, m_b, pos_inf))
    e = jnp.exp(y - sub)                 # out-of-segment lanes: exp(-inf) == 0
    s_a = jnp.sum(jnp.where(in_a, e, 0.0), axis=1, keepdims=True)
    s_b = jnp.sum(jnp.where(in_b, e, 0.0), axis=1, keepdims=True)
    inv = jnp.where(in_a, 1.0 / s_a, jnp.where(in_b, 1.0 / s_b, 0.0))  # exact

    value = jnp.where(lane < 1, y, 0.0)
    # Disjoint segments -> sum composes the slab; single lane-dense store.
    o_ref[...] = (value + e * inv).astype(o_ref.dtype)


def fused_actor_critic(x, params_slab, *, inputs_pad, h_pad, out_pad,
                       outputs, outputs_, row_block):
    batch_padded = x.shape[0]
    assert batch_padded % row_block == 0
    grid = (batch_padded // row_block,)
    p_rows, p_cols = params_slab.shape

    flops = 2 * batch_padded * inputs_pad * h_pad + 2 * batch_padded * h_pad * out_pad
    bytes_acc = 4 * (x.size + params_slab.size + batch_padded * out_pad)

    return pl.pallas_call(
        functools.partial(_fused_kernel, inputs_pad=inputs_pad, h_pad=h_pad,
                          out_pad=out_pad, outputs=outputs, outputs_=outputs_),
        out_shape=jax.ShapeDtypeStruct((batch_padded, out_pad), jnp.float32),
        grid=grid,
        in_specs=[pl.BlockSpec((row_block, inputs_pad), lambda i: (i, 0)),
                  pl.BlockSpec((p_rows, p_cols), lambda i: (0, 0))],
        out_specs=pl.BlockSpec((row_block, out_pad), lambda i: (i, 0)),
        compiler_params=pltpu.CompilerParams(dimension_semantics=("parallel",)),
        cost_estimate=pl.CostEstimate(
            flops=flops,
            transcendentals=batch_padded * out_pad,
            bytes_accessed=bytes_acc,
        ),
    )(x, params_slab)


def init_linear(key, fan_in, fan_out):
    """Matches nn.Linear init U(-1/sqrt(fan_in), 1/sqrt(fan_in)); W stored (in, out)."""
    kw, kb = jax.random.split(key)
    bound = 1.0 / jnp.sqrt(jnp.float32(fan_in))
    w = jax.random.uniform(kw, (fan_in, fan_out), jnp.float32, -bound, bound)
    b = jax.random.uniform(kb, (1, fan_out), jnp.float32, -bound, bound)
    return w, b


def make_actor_critic_params(key, inputs, outputs, outputs_, hidden_size):
    ks = jax.random.split(key, 6)
    return {
        "actor": (*init_linear(ks[0], inputs, hidden_size),
                  *init_linear(ks[1], hidden_size, outputs)),
        "actor_": (*init_linear(ks[2], inputs, hidden_size),
                   *init_linear(ks[3], hidden_size, outputs_)),
        "critic": (*init_linear(ks[4], inputs, hidden_size),
                   *init_linear(ks[5], hidden_size, 1)),
    }


def pack_fused_params(params, inputs, outputs, outputs_, hidden_size):
    """Pack all three heads into one (rows, lanes) f32 slab (single DMA).

    Row layout (all sections start on a multiple of 8 sublanes):
      [0              : inputs_pad     )  W1_cat  (inputs x h_pad)
      [inputs_pad     : inputs_pad+8   )  b1_cat  (row 0 used)
      [inputs_pad+8   : +h_pad         )  W2 block-diagonal (h_pad x out_pad)
      [inputs_pad+8+h : +8             )  b2_cat  (row 0 used)
    Hidden order: [critic | actor | actor_]; output columns:
    [value(1) | probs(outputs) | probs_(outputs_) | 0-pad].
    """
    aw1, ab1, aw2, ab2 = params["actor"]
    bw1, bb1, bw2, bb2 = params["actor_"]
    cw1, cb1, cw2, cb2 = params["critic"]
    H = hidden_size
    inputs_pad = _round_up(inputs, 8)
    h_pad = max(128, _round_up(3 * H, 128))
    out_total = 1 + outputs + outputs_
    out_pad = max(128, _round_up(out_total, 128))
    width = max(h_pad, out_pad)
    rows = inputs_pad + 8 + h_pad + 8

    slab = jnp.zeros((rows, width), jnp.float32)
    # layer-1 weights
    slab = slab.at[0:inputs, 0:H].set(cw1)
    slab = slab.at[0:inputs, H:2 * H].set(aw1)
    slab = slab.at[0:inputs, 2 * H:3 * H].set(bw1)
    # layer-1 biases
    r = inputs_pad
    slab = slab.at[r:r + 1, 0:H].set(cb1)
    slab = slab.at[r:r + 1, H:2 * H].set(ab1)
    slab = slab.at[r:r + 1, 2 * H:3 * H].set(bb1)
    # layer-2 weights (block-diagonal)
    r = inputs_pad + 8
    slab = slab.at[r:r + H, 0:1].set(cw2)
    slab = slab.at[r + H:r + 2 * H, 1:1 + outputs].set(aw2)
    slab = slab.at[r + 2 * H:r + 3 * H, 1 + outputs:out_total].set(bw2)
    # layer-2 biases
    r = inputs_pad + 8 + h_pad
    slab = slab.at[r:r + 1, 0:1].set(cb2)
    slab = slab.at[r:r + 1, 1:1 + outputs].set(ab2)
    slab = slab.at[r:r + 1, 1 + outputs:out_total].set(bb2)
    return slab


@functools.partial(jax.jit, static_argnames=("inputs", "outputs", "outputs_"))
def actor_critic_forward(params_slab, x, *, inputs, outputs, outputs_):
    """Returns (probs, probs_, value).
    TODO(synk): torch.distributions.Categorical has no Pallas equivalent; the
    returned probs / probs_ fully parameterize dist / dist_."""
    batch = x.shape[0]
    inputs_pad = _round_up(inputs, 8)
    rows, _ = params_slab.shape
    h_pad = rows - inputs_pad - 16
    out_total = 1 + outputs + outputs_
    out_pad = max(128, _round_up(out_total, 128))

    # Sublane padding: unmasked full-vreg loads/stores; large batches get a
    # parallel grid axis (v7x megacore) with weights resident across blocks.
    row_block = min(_round_up(batch, 8), 256)
    batch_padded = _round_up(batch, row_block)
    x_p = jnp.zeros((batch_padded, inputs_pad), jnp.float32)
    x_p = x_p.at[:batch, :inputs].set(x)

    slab = fused_actor_critic(x_p, params_slab, inputs_pad=inputs_pad,
                              h_pad=h_pad, out_pad=out_pad, outputs=outputs,
                              outputs_=outputs_, row_block=row_block)
    value = slab[:batch, 0:1]
    probs = slab[:batch, 1:1 + outputs]
    probs_ = slab[:batch, 1 + outputs:1 + outputs + outputs_]
    return probs, probs_, value


def _reference_forward(params, x):
    """Pure-JAX reference (exact softmax) for correctness checking."""
    def head(p, softmax):
        w1, b1, w2, b2 = p
        h = jnp.maximum(x @ w1 + b1, 0.0)
        y = h @ w2 + b2
        return jax.nn.softmax(y, axis=1) if softmax else y
    return (head(params["actor"], True),
            head(params["actor_"], True),
            head(params["critic"], False))


if __name__ == "__main__":
    batch = 2
    inputs = 32
    hidden_size = 32
    outputs = 6
    outputs_ = 4

    key = jax.random.PRNGKey(0)
    kp, kx = jax.random.split(key)
    params = make_actor_critic_params(kp, inputs, outputs, outputs_, hidden_size)
    slab = pack_fused_params(params, inputs, outputs, outputs_, hidden_size)
    x = jax.random.normal(kx, (batch, inputs), jnp.float32)

    probs, probs_, value = actor_critic_forward(slab, x, outputs=outputs,
                                                outputs_=outputs_, inputs=inputs)
    jax.block_until_ready((probs, probs_, value))

    # Correctness vs pure-JAX reference (exact divide -> tight tolerances).
    r_probs, r_probs_, r_value = _reference_forward(params, x)
    assert probs.shape == (batch, outputs)
    assert probs_.shape == (batch, outputs_)
    assert value.shape == (batch, 1)
    assert jnp.allclose(probs, r_probs, atol=1e-5)
    assert jnp.allclose(probs_, r_probs_, atol=1e-5)
    assert jnp.allclose(value, r_value, atol=1e-4)
    assert jnp.allclose(jnp.sum(probs, axis=1), 1.0, atol=1e-5)
    assert jnp.allclose(jnp.sum(probs_, axis=1), 1.0, atol=1e-5)

    print("KERNEL_OK")
</pallas_src>

<mosaic_0001>
module attributes {stable_mosaic.version = 11 : i64} {
  func.func @_fused_kernel(%arg0: i32, %arg1: memref<8x32xf32, #tpu.memory_space<vmem>>, %arg2: memref<176x128xf32, #tpu.memory_space<vmem>>, %arg3: memref<8x128xf32, #tpu.memory_space<vmem>>) attributes {dimension_semantics = [#tpu.dimension_semantics<parallel>], iteration_bounds = array<i64: 1>, scalar_prefetch = 0 : i64, scratch_operands = 0 : i64, tpu.core_type = #tpu.core_type<tc>, window_params = [{transform_indices = @transform_0, window_bounds = array<i64: 8, 32>}, {pipeline_mode = #tpu.pipeline_mode<synchronous>, transform_indices = @transform_1, window_bounds = array<i64: 176, 128>}, {transform_indices = @transform_2, window_bounds = array<i64: 8, 128>}]} {
    %c0 = arith.constant 0 : index
    %c0_0 = arith.constant 0 : index
    %0 = vector.load %arg1[%c0, %c0_0] : memref<8x32xf32, #tpu.memory_space<vmem>>, vector<8x32xf32>
    %c0_1 = arith.constant 0 : index
    %c0_2 = arith.constant 0 : index
    %1 = vector.load %arg2[%c0_1, %c0_2] : memref<176x128xf32, #tpu.memory_space<vmem>>, vector<32x128xf32>
    %c32 = arith.constant 32 : index
    %c0_3 = arith.constant 0 : index
    %2 = vector.load %arg2[%c32, %c0_3] : memref<176x128xf32, #tpu.memory_space<vmem>>, vector<1x128xf32>
    %c40 = arith.constant 40 : index
    %c0_4 = arith.constant 0 : index
    %3 = vector.load %arg2[%c40, %c0_4] : memref<176x128xf32, #tpu.memory_space<vmem>>, vector<128x128xf32>
    %c168 = arith.constant 168 : index
    %c0_5 = arith.constant 0 : index
    %4 = vector.load %arg2[%c168, %c0_5] : memref<176x128xf32, #tpu.memory_space<vmem>>, vector<1x128xf32>
    %cst = arith.constant dense<0.000000e+00> : vector<8x128xf32>
    %5 = tpu.matmul %0, %1, %cst {dimension_numbers = #tpu.dot_dimension_numbers<[1], [0], [0], [1], [0, 0, 1, 1], [], []>} : vector<8x32xf32>, vector<32x128xf32>, vector<8x128xf32> -> vector<8x128xf32>
    %6 = vector.broadcast %2 : vector<1x128xf32> to vector<8x128xf32>
    %7 = arith.addf %5, %6 : vector<8x128xf32>
    %cst_6 = arith.constant 0.000000e+00 : f32
    %8 = vector.broadcast %cst_6 : f32 to vector<8x128xf32>
    %9 = arith.maximumf %7, %8 : vector<8x128xf32>
    %cst_7 = arith.constant dense<0.000000e+00> : vector<8x128xf32>
    %10 = tpu.matmul %9, %3, %cst_7 {dimension_numbers = #tpu.dot_dimension_numbers<[1], [0], [0], [1], [0, 0, 1, 1], [], []>} : vector<8x128xf32>, vector<128x128xf32>, vector<8x128xf32> -> vector<8x128xf32>
    %11 = vector.broadcast %4 : vector<1x128xf32> to vector<8x128xf32>
    %12 = arith.addf %10, %11 : vector<8x128xf32>
    %13 = tpu.iota {dimensions = array<i32: 1>} : vector<8x128xi32>
    %c1_i32 = arith.constant 1 : i32
    %14 = vector.broadcast %c1_i32 : i32 to vector<8x128xi32>
    %15 = arith.cmpi sge, %13, %14 : vector<8x128xi32>
    %c7_i32 = arith.constant 7 : i32
    %16 = vector.broadcast %c7_i32 : i32 to vector<8x128xi32>
    %17 = arith.cmpi slt, %13, %16 : vector<8x128xi32>
    %18 = arith.andi %15, %17 : vector<8x128xi1>
    %c7_i32_8 = arith.constant 7 : i32
    %19 = vector.broadcast %c7_i32_8 : i32 to vector<8x128xi32>
    %20 = arith.cmpi sge, %13, %19 : vector<8x128xi32>
    %c11_i32 = arith.constant 11 : i32
    %21 = vector.broadcast %c11_i32 : i32 to vector<8x128xi32>
    %22 = arith.cmpi slt, %13, %21 : vector<8x128xi32>
    %23 = arith.andi %20, %22 : vector<8x128xi1>
    %cst_9 = arith.constant 0xFF800000 : f32
    %24 = vector.broadcast %cst_9 : f32 to vector<8x128xf32>
    %25 = arith.select %18, %12, %24 : vector<8x128xi1>, vector<8x128xf32>
    %cst_10 = arith.constant dense<0xFF800000> : vector<8xf32>
    %26 = vector.multi_reduction <maximumf>, %25, %cst_10 [1] : vector<8x128xf32> to vector<8xf32>
    %27 = vector.shape_cast %26 : vector<8xf32> to vector<8x1xf32>
    %cst_11 = arith.constant 0xFF800000 : f32
    %28 = vector.broadcast %cst_11 : f32 to vector<8x128xf32>
    %29 = arith.select %23, %12, %28 : vector<8x128xi1>, vector<8x128xf32>
    %cst_12 = arith.constant dense<0xFF800000> : vector<8xf32>
    %30 = vector.multi_reduction <maximumf>, %29, %cst_12 [1] : vector<8x128xf32> to vector<8xf32>
    %31 = vector.shape_cast %30 : vector<8xf32> to vector<8x1xf32>
    %cst_13 = arith.constant 0x7F800000 : f32
    %32 = vector.shape_cast %31 : vector<8x1xf32> to vector<8x1xf32>
    %33 = vector.broadcast %32 : vector<8x1xf32> to vector<8x128xf32>
    %34 = vector.broadcast %cst_13 : f32 to vector<8x128xf32>
    %35 = arith.select %23, %33, %34 : vector<8x128xi1>, vector<8x128xf32>
    %36 = vector.shape_cast %27 : vector<8x1xf32> to vector<8x1xf32>
    %37 = vector.broadcast %36 : vector<8x1xf32> to vector<8x128xf32>
    %38 = arith.select %18, %37, %35 : vector<8x128xi1>, vector<8x128xf32>
    %39 = arith.subf %12, %38 : vector<8x128xf32>
    %40 = math.exp %39 : vector<8x128xf32>
    %cst_14 = arith.constant 0.000000e+00 : f32
    %41 = vector.broadcast %cst_14 : f32 to vector<8x128xf32>
    %42 = arith.select %18, %40, %41 : vector<8x128xi1>, vector<8x128xf32>
    %cst_15 = arith.constant dense<0.000000e+00> : vector<8xf32>
    %43 = vector.multi_reduction <add>, %42, %cst_15 [1] : vector<8x128xf32> to vector<8xf32>
    %44 = vector.shape_cast %43 : vector<8xf32> to vector<8x1xf32>
    %cst_16 = arith.constant 0.000000e+00 : f32
    %45 = vector.broadcast %cst_16 : f32 to vector<8x128xf32>
    %46 = arith.select %23, %40, %45 : vector<8x128xi1>, vector<8x128xf32>
    %cst_17 = arith.constant dense<0.000000e+00> : vector<8xf32>
    %47 = vector.multi_reduction <add>, %46, %cst_17 [1] : vector<8x128xf32> to vector<8xf32>
    %48 = vector.shape_cast %47 : vector<8xf32> to vector<8x1xf32>
    %cst_18 = arith.constant 1.000000e+00 : f32
    %49 = vector.broadcast %cst_18 : f32 to vector<8x1xf32>
    %50 = arith.divf %49, %44 : vector<8x1xf32>
    %cst_19 = arith.constant 1.000000e+00 : f32
    %51 = vector.broadcast %cst_19 : f32 to vector<8x1xf32>
    %52 = arith.divf %51, %48 : vector<8x1xf32>
    %cst_20 = arith.constant 0.000000e+00 : f32
    %53 = vector.shape_cast %52 : vector<8x1xf32> to vector<8x1xf32>
    %54 = vector.broadcast %53 : vector<8x1xf32> to vector<8x128xf32>
    %55 = vector.broadcast %cst_20 : f32 to vector<8x128xf32>
    %56 = arith.select %23, %54, %55 : vector<8x128xi1>, vector<8x128xf32>
    %57 = vector.shape_cast %50 : vector<8x1xf32> to vector<8x1xf32>
    %58 = vector.broadcast %57 : vector<8x1xf32> to vector<8x128xf32>
    %59 = arith.select %18, %58, %56 : vector<8x128xi1>, vector<8x128xf32>
    %c1_i32_21 = arith.constant 1 : i32
    %60 = vector.broadcast %c1_i32_21 : i32 to vector<8x128xi32>
    %61 = arith.cmpi slt, %13, %60 : vector<8x128xi32>
    %cst_22 = arith.constant 0.000000e+00 : f32
    %62 = vector.broadcast %cst_22 : f32 to vector<8x128xf32>
    %63 = arith.select %61, %12, %62 : vector<8x128xi1>, vector<8x128xf32>
    %64 = arith.mulf %40, %59 : vector<8x128xf32>
    %65 = arith.addf %63, %64 : vector<8x128xf32>
    %c0_23 = arith.constant 0 : index
    %c0_24 = arith.constant 0 : index
    %66 = vector.load %arg3[%c0_23, %c0_24] : memref<8x128xf32, #tpu.memory_space<vmem>>, vector<8x128xf32>
    tpu.vector_store %arg3[%c0_23, %c0_24], %65 {strides = array<i32>} : memref<8x128xf32, #tpu.memory_space<vmem>>, vector<8x128xf32>,
    return
  }
  func.func @transform_0(%arg0: i32) -> (i32, i32) {
    %c0_i32 = arith.constant 0 : i32
    %c0_i32_0 = arith.constant 0 : i32
    return %arg0, %c0_i32 : i32, i32
  }
  func.func @transform_1(%arg0: i32) -> (i32, i32) {
    %c0_i32 = arith.constant 0 : i32
    %c0_i32_0 = arith.constant 0 : i32
    %c0_i32_1 = arith.constant 0 : i32
    return %c0_i32, %c0_i32_0 : i32, i32
  }
  func.func @transform_2(%arg0: i32) -> (i32, i32) {
    %c0_i32 = arith.constant 0 : i32
    %c0_i32_0 = arith.constant 0 : i32
    return %arg0, %c0_i32 : i32, i32
  }
}

</mosaic_0001>

<llo_original>
// kernel: actor_critic_forward.1
$region0: #{actor_critic_forward.1}
  #allocation0 [shape = 'u32[]', space=smem, size = 0x4, offset = 0x4, fixed_abs, tag = 'smem constant byte address 0x4 - core index']
  #allocation1 [shape = 'u32[144,128]{1,0:T(1,128)}', space=vmem, size = 0x12000, scoped, tag = 'internal scratch']
  %s0 = inlined_call_operand.vmem [shape: f32[8,32], index: 0, kind: input, shape index: {}]
  %s1 = inlined_call_operand.hbm [shape: f32[176,128], index: 1, kind: input, shape index: {}]
  %s2 = inlined_call_operand.vmem [shape: f32[8,128], index: 2, kind: output, shape index: {}]
  %s3 = sld [smem:[#allocation0]]
  $region22: #{actor_critic_forward.1} parent=0
    _
  %s5 = ssub.s32 1, %s3
  %s6 = scalar_select 0, %s5, %s3
  $region1: #{actor_critic_forward.1} parent=0
    #allocation2 [shape = 'u8[90112]{0}', space=vmem, size = 0x16000, scoped, tag = 'input window, operand 1, single buffered']
    #allocation3 [shape = 's32[1]{0}', space=sflag, size = 0x4, scoped, tag = 'scoped memory for actor_critic_forward.1']
    %7 = vsyncpa [#allocation3], 0
    // Predicated region
    $region2: #{actor_critic_forward.1} parent=1 // pred_check
      _
    $region3: #{actor_critic_forward.1} parent=1 // pred_check_branch
      %9 = sbr.rel (0) target = $region5
    $region4: #{actor_critic_forward.1} parent=1 // pred_region
      _
    $region5: #{actor_critic_forward.1} parent=1 // pred_fallthru
      _
    // Predicated region
    $region6: #{actor_critic_forward.1} parent=1 // pred_check
      _
    $region7: #{actor_critic_forward.1} parent=1 // pred_check_branch
      %11 = sbr.rel (0) target = $region9
    $region8: #{actor_critic_forward.1} parent=1 // pred_region
      %s13 = ssub.s32 2816, 2816
      %14 = vsyncadd [#allocation3], %s13
      %s15 = sshll.u32 [#allocation2], 4
      %s16 = int_to_ptr.vmem [resolvable:$true] %s15
      %21 = dma.hbm_to_vmem [thread:$0]  %s1, 2816, %s16, [#allocation3], 128, 128, 8
    $region9: #{actor_critic_forward.1} parent=1 // pred_fallthru
      _
    // Predicated region
    $region10: #{actor_critic_forward.1} parent=1 // pred_check
      _
    $region11: #{actor_critic_forward.1} parent=1 // pred_check_branch
      %23 = sbr.rel (0) target = $region13
    $region12: #{actor_critic_forward.1} parent=1 // pred_region
      %24 = dma.done [#allocation3], 2816
    $region13: #{actor_critic_forward.1} parent=1 // pred_fallthru
      _
    %v25 = vld [vmem:[%s0] sm:$0xff]
    %v26 = vld [vmem:[#allocation2] sm:$0xff]
    %v27 = vld [vmem:[#allocation2 + $0x8] sm:$0xff]
    %v28 = vld [vmem:[#allocation2 + $0x10] sm:$0xff]
    %v29 = vld [vmem:[#allocation2 + $0x18] sm:$0xff]
    %v30 = vld [vmem:[#allocation2 + $0x20] sm:$0x1]
    %v31 = vld [vmem:[#allocation2 + $0x28] sm:$0xff]
    %v32 = vld [vmem:[#allocation2 + $0x30] sm:$0xff]
    %v33 = vld [vmem:[#allocation2 + $0x38] sm:$0xff]
    %v34 = vld [vmem:[#allocation2 + $0x40] sm:$0xff]
    %v35 = vld [vmem:[#allocation2 + $0x48] sm:$0xff]
    %v36 = vld [vmem:[#allocation2 + $0x50] sm:$0xff]
    %v37 = vld [vmem:[#allocation2 + $0x58] sm:$0xff]
    %v38 = vld [vmem:[#allocation2 + $0x60] sm:$0xff]
    %v39 = vld [vmem:[#allocation2 + $0x68] sm:$0xff]
    %v40 = vld [vmem:[#allocation2 + $0x70] sm:$0xff]
    %v41 = vld [vmem:[#allocation2 + $0x78] sm:$0xff]
    %v42 = vld [vmem:[#allocation2 + $0x80] sm:$0xff]
    %v43 = vld [vmem:[#allocation2 + $0x88] sm:$0xff]
    %v44 = vld [vmem:[#allocation2 + $0x90] sm:$0xff]
    %v45 = vld [vmem:[#allocation2 + $0x98] sm:$0xff]
    %v46 = vld [vmem:[#allocation2 + $0xa0] sm:$0xff]
    %v47 = vld [vmem:[#allocation2 + $0xa8] sm:$0x1]
    %v48 = vlaneseq
    %v49 = vshrl.u32 %v48, 7
    %v50 = vsub.s32 0, %v49
    %v51 = vrot.slane %v30, %v50
    %vm52 = vcmask 261120
    %v54 = vsel %vm52, %v25, 0
    %56 = vmatprep.subr.mxu0 0.0
    %57 = vmatpush1.msra.mxu0 %v26
    %58 = vmatprep.subr.mxu0 0.0
    %59 = vmatpush1.msra.mxu0 %v27
    %60 = vmatprep.subr.mxu0 0.0
    %61 = vmatpush1.msra.mxu0 %v28
    %62 = vmatprep.subr.mxu0 0.0
    %63 = vmatpush1.msra.mxu0 %v29
    %64 = vmatprep.subr.mxu0 0.0
    %65 = vmatpush1.msra.mxu0 0.0
    %66 = vmatprep.subr.mxu0 0.0
    %67 = vmatpush1.msra.mxu0 0.0
    %68 = vmatprep.subr.mxu0 0.0
    %69 = vmatpush1.msra.mxu0 0.0
    %70 = vmatprep.subr.mxu0 0.0
    %71 = vmatpush1.msra.mxu0 0.0
    %72 = vmatprep.subr.mxu0 0.0
    %73 = vmatpush1.msra.mxu0 0.0
    %74 = vmatprep.subr.mxu0 0.0
    %75 = vmatpush1.msra.mxu0 0.0
    %76 = vmatprep.subr.mxu0 0.0
    %77 = vmatpush1.msra.mxu0 0.0
    %78 = vmatprep.subr.mxu0 0.0
    %79 = vmatpush1.msra.mxu0 0.0
    %80 = vmatprep.subr.mxu0 0.0
    %81 = vmatpush1.msra.mxu0 0.0
    %82 = vmatprep.subr.mxu0 0.0
    %83 = vmatpush1.msra.mxu0 0.0
    %84 = vmatprep.subr.mxu0 0.0
    %85 = vmatpush1.msra.mxu0 0.0
    %86 = vmatprep.subr.mxu0 0.0
    %87 = vmatpush1.msra.mxu0 0.0
    %88 = vmatprep.subr.mxu0 0.0
    %89 = vmatpush1.msra.mxu0 0.0
    %90 = vmatprep.subr.mxu0 0.0
    %91 = vmatpush1.msra.mxu0 0.0
    %92 = vmatprep.subr.mxu0 0.0
    %93 = vmatpush1.msra.mxu0 0.0
    %94 = vmatprep.subr.mxu0 0.0
    %95 = vmatpush1.msra.mxu0 0.0
    %96 = vmatprep.subr.mxu0 0.0
    %97 = vmatpush1.msra.mxu0 0.0
    %98 = vmatprep.subr.mxu0 0.0
    %99 = vmatpush1.msra.mxu0 0.0
    %100 = vmatprep.subr.mxu0 0.0
    %101 = vmatpush1.msra.mxu0 0.0
    %102 = vmatprep.subr.mxu0 0.0
    %103 = vmatpush1.msra.mxu0 0.0
    %104 = vmatprep.subr.mxu0 0.0
    %105 = vmatpush1.msra.mxu0 0.0
    %106 = vmatprep.subr.mxu0 0.0
    %107 = vmatpush1.msra.mxu0 0.0
    %108 = vmatprep.subr.mxu0 0.0
    %109 = vmatpush1.msra.mxu0 0.0
    %110 = vmatprep.subr.mxu0 0.0
    %111 = vmatpush1.msra.mxu0 0.0
    %112 = vmatprep.subr.mxu0 0.0
    %113 = vmatpush1.msra.mxu0 0.0
    %114 = vmatprep.subr.mxu0 0.0
    %115 = vmatpush1.msra.mxu0 0.0
    %116 = vmatprep.subr.mxu0 0.0
    %117 = vmatpush1.msra.mxu0 0.0
    %118 = vmatprep.subr.mxu0 0.0
    %119 = vmatpush1.msra.mxu0 0.0
    %120 = vmatprep.mubr.f32.mxu0 0.0
    %121 = vmatmul.mubr.f32.gmra.mrb[0].mxu0 %v54
    %v122 = vpop.f32.mrb[0].mxu0
    %v123 = vadd.f32 %v51, %v122
    %v124 = vpop.f32.mrb[0].mxu0
    %125 = vdwg.mxu0
    %v126 = vmax.f32 %v123, 0.0
    %v127 = vlaneseq
    %v128 = vshrl.u32 %v127, 7
    %v129 = vsub.s32 0, %v128
    %v130 = vrot.slane %v47, %v129
    %131 = vmatprep.subr.mxu0 0.0
    %132 = vmatpush1.msra.mxu0 %v31
    %133 = vmatprep.subr.mxu0 0.0
    %134 = vmatpush1.msra.mxu0 %v32
    %135 = vmatprep.subr.mxu0 0.0
    %136 = vmatpush1.msra.mxu0 %v33
    %137 = vmatprep.subr.mxu0 0.0
    %138 = vmatpush1.msra.mxu0 %v34
    %139 = vmatprep.subr.mxu0 0.0
    %140 = vmatpush1.msra.mxu0 %v35
    %141 = vmatprep.subr.mxu0 0.0
    %142 = vmatpush1.msra.mxu0 %v36
    %143 = vmatprep.subr.mxu0 0.0
    %144 = vmatpush1.msra.mxu0 %v37
    %145 = vmatprep.subr.mxu0 0.0
    %146 = vmatpush1.msra.mxu0 %v38
    %147 = vmatprep.subr.mxu0 0.0
    %148 = vmatpush1.msra.mxu0 %v39
    %149 = vmatprep.subr.mxu0 0.0
    %150 = vmatpush1.msra.mxu0 %v40
    %151 = vmatprep.subr.mxu0 0.0
    %152 = vmatpush1.msra.mxu0 %v41
    %153 = vmatprep.subr.mxu0 0.0
    %154 = vmatpush1.msra.mxu0 %v42
    %155 = vmatprep.subr.mxu0 0.0
    %156 = vmatpush1.msra.mxu0 %v43
    %157 = vmatprep.subr.mxu0 0.0
    %158 = vmatpush1.msra.mxu0 %v44
    %159 = vmatprep.subr.mxu0 0.0
    %160 = vmatpush1.msra.mxu0 %v45
    %161 = vmatprep.subr.mxu0 0.0
    %162 = vmatpush1.msra.mxu0 %v46
    %163 = vmatprep.subr.mxu0 0.0
    %164 = vmatpush1.msra.mxu0 0.0
    %165 = vmatprep.subr.mxu0 0.0
    %166 = vmatpush1.msra.mxu0 0.0
    %167 = vmatprep.subr.mxu0 0.0
    %168 = vmatpush1.msra.mxu0 0.0
    %169 = vmatprep.subr.mxu0 0.0
    %170 = vmatpush1.msra.mxu0 0.0
    %171 = vmatprep.subr.mxu0 0.0
    %172 = vmatpush1.msra.mxu0 0.0
    %173 = vmatprep.subr.mxu0 0.0
    %174 = vmatpush1.msra.mxu0 0.0
    %175 = vmatprep.subr.mxu0 0.0
    %176 = vmatpush1.msra.mxu0 0.0
    %177 = vmatprep.subr.mxu0 0.0
    %178 = vmatpush1.msra.mxu0 0.0
    %179 = vmatprep.subr.mxu0 0.0
    %180 = vmatpush1.msra.mxu0 0.0
    %181 = vmatprep.subr.mxu0 0.0
    %182 = vmatpush1.msra.mxu0 0.0
    %183 = vmatprep.subr.mxu0 0.0
    %184 = vmatpush1.msra.mxu0 0.0
    %185 = vmatprep.subr.mxu0 0.0
    %186 = vmatpush1.msra.mxu0 0.0
    %187 = vmatprep.subr.mxu0 0.0
    %188 = vmatpush1.msra.mxu0 0.0
    %189 = vmatprep.subr.mxu0 0.0
    %190 = vmatpush1.msra.mxu0 0.0
    %191 = vmatprep.subr.mxu0 0.0
    %192 = vmatpush1.msra.mxu0 0.0
    %193 = vmatprep.subr.mxu0 0.0
    %194 = vmatpush1.msra.mxu0 0.0
    %195 = vmatprep.mubr.f32.mxu0 0.0
    %196 = vmatmul.mubr.f32.gmra.mrb[0].mxu0 %v126
    %v197 = vpop.f32.mrb[0].mxu0
    %v198 = vadd.f32 %v130, %v197
    %v199 = vpop.f32.mrb[0].mxu0
    %200 = vdwg.mxu0
    %v201 = vlaneseq
    %v202 = vand.u32 %v201, 127
    %vm203 = vcmp.ge.s32.totalorder %v202, 1
    %vm204 = vcmp.lt.s32.totalorder %v202, 7
    %vm205 = vmand %vm203, %vm204
    %vm206 = vcmp.ge.s32.totalorder %v202, 7
    %vm207 = vcmp.lt.s32.totalorder %v202, 11
    %vm208 = vmand %vm206, %vm207
    %v209 = vsel %vm205, %v198, -inf
    %210 = vmax.xlane.f32.xlu0 %v209
    %v211 = vpop.xlane.xlu0 %210
    %v212 = vsel %vm208, %v198, -inf
    %213 = vmax.xlane.f32.xlu0 %v212
    %v214 = vpop.xlane.xlu0 %213
    %v215 = vsel %vm208, %v214, inf
    %v216 = vsel %vm205, %v211, %v215
    %v217 = vsub.f32 %v198, %v216
    %v218 = vmul.f32 %v217, 1.442695
    %v219 = vpow.pop %v218
    %v220 = vsel %vm205, %v219, 0.0
    %221 = vadd.xlane.f32.xlu0 %v220
    %v222 = vpop.xlane.xlu0 %221
    %v223 = vsel %vm208, %v219, 0.0
    %224 = vadd.xlane.f32.xlu0 %v223
    %v225 = vpop.xlane.xlu0 %224
    %v226 = vrcp.pop %v222
    %v227 = vmul.f32 1.0, %v226
    %v228 = vrcp.pop %v225
    %v229 = vmul.f32 1.0, %v228
    %v230 = vsel %vm208, %v229, 0.0
    %v231 = vsel %vm205, %v227, %v230
    %vm232 = vcmp.lt.s32.totalorder %v202, 1
    %v233 = vsel %vm232, %v198, 0.0
    %v234 = vmul.f32 %v219, %v231
    %v235 = vadd.f32 %v233, %v234
    %236 = vst [vmem:[%s2] sm:$0xff] %v235
    // Predicated region
    $region14: #{actor_critic_forward.1} parent=1 // pred_check
      _
    $region15: #{actor_critic_forward.1} parent=1 // pred_check_branch
      %238 = sbr.rel (0) target = $region17
    $region16: #{actor_critic_forward.1} parent=1 // pred_region
      _
    $region17: #{actor_critic_forward.1} parent=1 // pred_fallthru
      _
    // Predicated region
    $region18: #{actor_critic_forward.1} parent=1 // pred_check
      _
    $region19: #{actor_critic_forward.1} parent=1 // pred_check_branch
      %240 = sbr.rel (0) target = $region21
    $region20: #{actor_critic_forward.1} parent=1 // pred_region
      _
    $region21: #{actor_critic_forward.1} parent=1 // pred_fallthru
      _
    %241 = vsyncpa [#allocation3], 1

</llo_original>
